<compile_context>
chip_gen: v6e
topology: v6e:2x2x1
jax: 0.10.0
libtpu: 0.0.40
codegen_flags: <defaults>
</compile_context>

<pallas_src>
import functools

import jax
import jax.numpy as jnp
from jax import lax
from jax.experimental import pallas as pl
from jax.experimental.pallas import tpu as pltpu

# Toy shapes (the real module hard-codes N=235868 nodes, E=2358104 edges and a
# 512-wide proj hidden; scaled down, structure preserved).
N_NODES  = 64
N_EDGES  = 1000         # deliberately NOT a tile multiple: exercises E-padding
IN_DIM   = 8
HIDDEN   = 32
PROJ_HID = 64           # stands in for the hard-coded 512
EDGE_DIM = 2            # embedding_e input dim
TILE_E   = 256          # edge rows per grid step (8k-16k v5e/v6e, 4k-8k v7x)
H_PAD    = 128          # lane-pad hidden so stores are full-lane / unmasked
BN_EPS   = 1e-5


def _round_up(x, m):
    return (x + m - 1) // m * m


def mefg_kernel(x_ref, w2p_ref, wf_ref, u_ref, scale_ref, shift_ref, out_ref):
    # Two MXU matmuls accumulated in f32, then a fused (bias+BN)+ReLU epilogue.
    acc = jnp.dot(x_ref[...], wf_ref[...], preferred_element_type=jnp.float32)
    acc = acc + jnp.dot(w2p_ref[...].astype(u_ref.dtype), u_ref[...],
                        preferred_element_type=jnp.float32)
    # TODO(synk): dropout is identity in inference mode, omitted.
    out_ref[...] = jnp.maximum(acc * scale_ref[...] + shift_ref[...],
                               0.0).astype(out_ref.dtype)


def prepare_params(params, *, tile_e=TILE_E, stream_dtype=jnp.bfloat16):
    """One-time (model-load) weight folding, padding and dtype casting.

    Keeps the per-call path free of big static-weight work — in particular the
    [E, P] w2p stream is cast to the stream dtype exactly once here.
    """
    HID, D = params["wep2"].shape
    P = params["w1"].shape[0]
    E = params["w2p"].shape[0]
    edge_dim = params["we"].shape[1]

    # ---- fold Conv1d(2->1, k=3, pad=1) into edge_proj2 ---------------------
    def band(w):
        return (w[0] * jnp.eye(D, k=1) + w[1] * jnp.eye(D)
                + w[2] * jnp.eye(D, k=-1))

    w_src = band(params["conv_w"][0, 0]) @ params["wep2"].T          # [D, HID]
    w_dst = band(params["conv_w"][0, 1]) @ params["wep2"].T          # [D, HID]

    # ---- fused per-edge weight: [src | dst | e_in | b2p] columns -----------
    w3_rowsum = params["w3"].sum(axis=1)                             # [HID]
    Wf = jnp.concatenate([w_src, w_dst, params["we"].T,
                          w3_rowsum[None, :]], axis=0)               # [F, HID]
    bias_all = (params["conv_b"][0] * params["wep2"].sum(axis=1)
                + params["bep2"] + params["be"] + params["b3"])      # [HID]

    # ---- fold all biases + inference BatchNorm into one scale/shift --------
    s = params["gamma"] * lax.rsqrt(params["rvar"] + BN_EPS)
    scale = s
    shift = params["beta"] + (bias_all - params["rmean"]) * s

    # ---- padding: feature axis to 8 sublanes, hidden axis to 128 lanes -----
    F = 2 * D + edge_dim + 1
    f_pad = _round_up(F, 8)
    hid_pad = _round_up(max(HID, H_PAD), 128)
    Wf = jnp.pad(Wf, ((0, f_pad - F), (0, hid_pad - HID)))
    scale = jnp.pad(scale, (0, hid_pad - HID), constant_values=1.0)[None, :]
    shift = jnp.pad(shift, (0, hid_pad - HID))[None, :]
    # proj3 weight pre-padded on the hidden axis so U needs no per-call pad.
    w3_pad = jnp.pad(params["w3"], ((0, hid_pad - HID), (0, 0)))     # [hid_pad, D]

    # ---- pad the edge axis to a tile multiple (real E isn't divisible) -----
    e_pad = _round_up(E, tile_e)
    if (e_pad // tile_e) % 2:            # even grid length -> v7x's 2 TCs split evenly
        e_pad += tile_e
    # Cast the dominant [E, P] stream to the stream dtype ONCE, here.
    w2p_s = jnp.pad(params["w2p"], ((0, e_pad - E), (0, 0))).astype(stream_dtype)

    return dict(
        w1=params["w1"], b1=params["b1"], w3_pad=w3_pad,
        w2p=w2p_s, b2p=params["b2p"],
        Wf=Wf, scale=scale, shift=shift,
    )


@functools.partial(jax.jit,
                   static_argnames=("tile_e", "out_dtype", "return_padded", "hid"))
def mefg_forward(prep, src_idx, dst_idx, h, e_in, *, tile_e=TILE_E,
                 out_dtype=jnp.float32, return_padded=True, hid=None):
    h = h.astype(jnp.float32)
    e_in = e_in.astype(jnp.float32)
    E = e_in.shape[0]
    e_pad, P = prep["w2p"].shape
    f_pad, hid_pad = prep["Wf"].shape
    assert e_pad % tile_e == 0 and tile_e % 8 == 0

    # ---- hoisted global branch: proj1+relu folded with proj3 ---------------
    t = jnp.maximum(h.T @ prep["w1"].T + prep["b1"], 0.0)            # [D, P]
    U = t.T @ prep["w3_pad"].T                                       # [P, hid_pad]

    # ---- one fused per-edge stream [src | dst | e_in | b2p] ----------------
    # graph glue: apply_edges gathers happen here (fused under jit).
    X = jnp.concatenate([h[src_idx], h[dst_idx], e_in,
                         prep["b2p"][:, None]], axis=1)              # [E, F]
    F = X.shape[1]
    X = jnp.pad(X, ((0, e_pad - E), (0, f_pad - F)))

    n_steps = e_pad // tile_e

    # ---- VMEM budget: double-buffered tiles + resident weights + margin ----
    w2p_bytes = jnp.dtype(prep["w2p"].dtype).itemsize
    out_bytes = jnp.dtype(out_dtype).itemsize
    est = (2 * tile_e * f_pad * 4 +                 # X tiles (f32)
           2 * tile_e * P * w2p_bytes +             # w2p tiles (dominant stream)
           2 * tile_e * hid_pad * out_bytes +       # output tiles
           f_pad * hid_pad * 4 + P * hid_pad * 4 +  # resident Wf, U
           2 * hid_pad * 4)                         # scale, shift
    vmem_limit = max(int(est * 1.5), 16 * 1024 * 1024)

    tile = lambda cols: pl.BlockSpec((tile_e, cols), lambda j: (j, 0))
    full = lambda shape: pl.BlockSpec(shape, lambda j: (0, 0))

    out = pl.pallas_call(
        mefg_kernel,
        out_shape=jax.ShapeDtypeStruct((e_pad, hid_pad), out_dtype),
        grid_spec=pltpu.PrefetchScalarGridSpec(
            num_scalar_prefetch=0,
            grid=(n_steps,),
            in_specs=[
                tile(f_pad),                 # fused per-edge features X
                tile(P),                     # proj2 weight rows (dominant stream)
                full((f_pad, hid_pad)),      # fused local/embedding weight Wf
                full((P, hid_pad)),          # U = relu(h^T W1^T + b1)^T @ W3^T
                full((1, hid_pad)),          # folded BN scale
                full((1, hid_pad)),          # folded BN shift (+ all biases)
            ],
            out_specs=tile(hid_pad),
        ),
        compiler_params=pltpu.CompilerParams(
            dimension_semantics=("parallel",),   # no cross-step state -> megacore-safe
            vmem_limit_bytes=vmem_limit),
    )(X, prep["w2p"], prep["Wf"], U, prep["scale"], prep["shift"])

    if return_padded:
        # Lanes hid..hid_pad-1 are exact zeros (zero-padded Wf/U, scale=1, shift=0).
        return out[:E] if e_pad != E else out
    assert hid is not None, "hid (original hidden width) required when slicing"
    return out[:E, :hid]


def mefg_reference(params, src_idx, dst_idx, h, e_in):
    """Pure-JAX replica of the PyTorch forward (inference mode)."""
    h = h.astype(jnp.float32)
    edge = jnp.concatenate([h[src_idx][:, None, :], h[dst_idx][:, None, :]], 1)
    conv = lax.conv_general_dilated(
        edge, params["conv_w"], window_strides=(1,), padding=((1, 1),),
        dimension_numbers=("NCH", "OIH", "NCH")) \
        + params["conv_b"][None, :, None]
    lr_local = conv[:, 0, :] @ params["wep2"].T + params["bep2"]
    h_e = h.T                                                # [in_dim, N]
    t = jnp.maximum(h_e @ params["w1"].T + params["b1"], 0.0)
    h_e2 = t @ params["w2p"].T + params["b2p"]               # [in_dim, E]
    lr_global = h_e2.T @ params["w3"].T + params["b3"]
    emb = e_in.astype(jnp.float32) @ params["we"].T + params["be"]
    x = emb + lr_local + lr_global
    x = ((x - params["rmean"]) / jnp.sqrt(params["rvar"] + BN_EPS)
         * params["gamma"] + params["beta"])
    return jnp.maximum(x, 0.0)


def init_params(key):
    ks = jax.random.split(key, 12)
    return {
        "w1":     0.1 * jax.random.normal(ks[0],  (PROJ_HID, N_NODES), jnp.float32),
        "b1":     0.1 * jax.random.normal(ks[1],  (PROJ_HID,),         jnp.float32),
        "w2p":    0.1 * jax.random.normal(ks[2],  (N_EDGES, PROJ_HID), jnp.float32),
        "b2p":    0.1 * jax.random.normal(ks[3],  (N_EDGES,),          jnp.float32),
        "w3":     0.1 * jax.random.normal(ks[4],  (HIDDEN, IN_DIM),    jnp.float32),
        "b3":     0.1 * jax.random.normal(ks[5],  (HIDDEN,),           jnp.float32),
        "conv_w": 0.1 * jax.random.normal(ks[6],  (1, 2, 3),           jnp.float32),
        "conv_b": 0.1 * jax.random.normal(ks[7],  (1,),                jnp.float32),
        "wep2":   0.1 * jax.random.normal(ks[8],  (HIDDEN, IN_DIM),    jnp.float32),
        "bep2":   0.1 * jax.random.normal(ks[9],  (HIDDEN,),           jnp.float32),
        "we":     0.1 * jax.random.normal(ks[10], (HIDDEN, EDGE_DIM),  jnp.float32),
        "be":     0.1 * jax.random.normal(ks[11], (HIDDEN,),           jnp.float32),
        "gamma":  jnp.full((HIDDEN,), 1.1,  jnp.float32),
        "beta":   jnp.full((HIDDEN,), 0.05, jnp.float32),
        "rmean":  jnp.full((HIDDEN,), 0.02, jnp.float32),
        "rvar":   jnp.full((HIDDEN,), 0.9,  jnp.float32),
    }


if __name__ == "__main__":
    key = jax.random.PRNGKey(0)
    k_par, k_h, k_e, k_src, k_dst = jax.random.split(key, 5)
    params = init_params(k_par)

    h = jax.random.normal(k_h, (N_NODES, IN_DIM), jnp.float32)       # node feats
    e_in = jax.random.normal(k_e, (N_EDGES, EDGE_DIM), jnp.float32)  # edge feats
    src_idx = jax.random.randint(k_src, (N_EDGES,), 0, N_NODES)
    dst_idx = jax.random.randint(k_dst, (N_EDGES,), 0, N_NODES)

    ref = mefg_reference(params, src_idx, dst_idx, h, e_in)

    # exact-precision path (f32 streaming of w2p)
    prep_f32 = prepare_params(params, stream_dtype=jnp.float32)
    out_f32 = mefg_forward(prep_f32, src_idx, dst_idx, h, e_in)
    jax.block_until_ready(out_f32)

    # bf16-streamed path (halves the dominant HBM stream at real scale);
    # the bf16 cast happened once in prepare_params, not per call.
    prep_bf16 = prepare_params(params, stream_dtype=jnp.bfloat16)
    out_bf16 = mefg_forward(prep_bf16, src_idx, dst_idx, h, e_in)
    jax.block_until_ready(out_bf16)

    assert out_f32.shape == (N_EDGES, H_PAD)        # padded lane layout
    ok_f32 = bool(jnp.allclose(out_f32[:, :HIDDEN], ref, atol=2e-4, rtol=2e-4))
    ok_bf16 = bool(jnp.allclose(out_bf16[:, :HIDDEN], ref, atol=5e-2, rtol=5e-2))
    ok_pad = bool(jnp.all(out_f32[:, HIDDEN:] == 0.0))   # padded lanes are zeros

    if ok_f32 and ok_bf16 and ok_pad:
        print("KERNEL_OK")
    else:
        print("MISMATCH f32_err=%.3e bf16_err=%.3e pad_ok=%s" % (
            float(jnp.max(jnp.abs(out_f32[:, :HIDDEN] - ref))),
            float(jnp.max(jnp.abs(out_bf16[:, :HIDDEN] - ref))),
            ok_pad))
</pallas_src>

<mosaic_0001>
module attributes {stable_mosaic.version = 11 : i64} {
  func.func @mefg_kernel(%arg0: i32, %arg1: memref<256x24xf32, #tpu.memory_space<vmem>>, %arg2: memref<256x64xf32, #tpu.memory_space<vmem>>, %arg3: memref<24x128xf32, #tpu.memory_space<vmem>>, %arg4: memref<64x128xf32, #tpu.memory_space<vmem>>, %arg5: memref<1x128xf32, #tpu.memory_space<vmem>>, %arg6: memref<1x128xf32, #tpu.memory_space<vmem>>, %arg7: memref<256x128xf32, #tpu.memory_space<vmem>>) attributes {dimension_semantics = [#tpu.dimension_semantics<parallel>], iteration_bounds = array<i64: 4>, scalar_prefetch = 0 : i64, scratch_operands = 0 : i64, tpu.core_type = #tpu.core_type<tc>, window_params = [{transform_indices = @transform_0, window_bounds = array<i64: 256, 24>}, {transform_indices = @transform_1, window_bounds = array<i64: 256, 64>}, {pipeline_mode = #tpu.pipeline_mode<synchronous>, transform_indices = @transform_2, window_bounds = array<i64: 24, 128>}, {pipeline_mode = #tpu.pipeline_mode<synchronous>, transform_indices = @transform_3, window_bounds = array<i64: 64, 128>}, {pipeline_mode = #tpu.pipeline_mode<synchronous>, transform_indices = @transform_4, window_bounds = array<i64: 1, 128>}, {pipeline_mode = #tpu.pipeline_mode<synchronous>, transform_indices = @transform_5, window_bounds = array<i64: 1, 128>}, {transform_indices = @transform_6, window_bounds = array<i64: 256, 128>}]} {
    %c0 = arith.constant 0 : index
    %c0_0 = arith.constant 0 : index
    %0 = vector.load %arg1[%c0, %c0_0] : memref<256x24xf32, #tpu.memory_space<vmem>>, vector<256x24xf32>
    %c0_1 = arith.constant 0 : index
    %c0_2 = arith.constant 0 : index
    %1 = vector.load %arg3[%c0_1, %c0_2] : memref<24x128xf32, #tpu.memory_space<vmem>>, vector<24x128xf32>
    %cst = arith.constant dense<0.000000e+00> : vector<256x128xf32>
    %2 = tpu.matmul %0, %1, %cst {dimension_numbers = #tpu.dot_dimension_numbers<[1], [0], [0], [1], [0, 0, 1, 1], [], []>} : vector<256x24xf32>, vector<24x128xf32>, vector<256x128xf32> -> vector<256x128xf32>
    %c0_3 = arith.constant 0 : index
    %c0_4 = arith.constant 0 : index
    %3 = vector.load %arg2[%c0_3, %c0_4] : memref<256x64xf32, #tpu.memory_space<vmem>>, vector<256x64xf32>
    %c0_5 = arith.constant 0 : index
    %c0_6 = arith.constant 0 : index
    %4 = vector.load %arg4[%c0_5, %c0_6] : memref<64x128xf32, #tpu.memory_space<vmem>>, vector<64x128xf32>
    %cst_7 = arith.constant dense<0.000000e+00> : vector<256x128xf32>
    %5 = tpu.matmul %3, %4, %cst_7 {dimension_numbers = #tpu.dot_dimension_numbers<[1], [0], [0], [1], [0, 0, 1, 1], [], []>} : vector<256x64xf32>, vector<64x128xf32>, vector<256x128xf32> -> vector<256x128xf32>
    %6 = arith.addf %2, %5 : vector<256x128xf32>
    %c0_8 = arith.constant 0 : index
    %c0_9 = arith.constant 0 : index
    %7 = vector.load %arg5[%c0_8, %c0_9] : memref<1x128xf32, #tpu.memory_space<vmem>>, vector<1x128xf32>
    %8 = vector.broadcast %7 : vector<1x128xf32> to vector<256x128xf32>
    %9 = arith.mulf %6, %8 : vector<256x128xf32>
    %c0_10 = arith.constant 0 : index
    %c0_11 = arith.constant 0 : index
    %10 = vector.load %arg6[%c0_10, %c0_11] : memref<1x128xf32, #tpu.memory_space<vmem>>, vector<1x128xf32>
    %11 = vector.broadcast %10 : vector<1x128xf32> to vector<256x128xf32>
    %12 = arith.addf %9, %11 : vector<256x128xf32>
    %cst_12 = arith.constant 0.000000e+00 : f32
    %13 = vector.broadcast %cst_12 : f32 to vector<256x128xf32>
    %14 = arith.maximumf %12, %13 : vector<256x128xf32>
    %c0_13 = arith.constant 0 : index
    %c0_14 = arith.constant 0 : index
    %15 = vector.load %arg7[%c0_13, %c0_14] : memref<256x128xf32, #tpu.memory_space<vmem>>, vector<256x128xf32>
    tpu.vector_store %arg7[%c0_13, %c0_14], %14 {strides = array<i32>} : memref<256x128xf32, #tpu.memory_space<vmem>>, vector<256x128xf32>,
    return
  }
  func.func @transform_0(%arg0: i32) -> (i32, i32) {
    %c0_i32 = arith.constant 0 : i32
    %c0_i32_0 = arith.constant 0 : i32
    return %arg0, %c0_i32 : i32, i32
  }
  func.func @transform_1(%arg0: i32) -> (i32, i32) {
    %c0_i32 = arith.constant 0 : i32
    %c0_i32_0 = arith.constant 0 : i32
    return %arg0, %c0_i32 : i32, i32
  }
  func.func @transform_2(%arg0: i32) -> (i32, i32) {
    %c0_i32 = arith.constant 0 : i32
    %c0_i32_0 = arith.constant 0 : i32
    %c0_i32_1 = arith.constant 0 : i32
    return %c0_i32, %c0_i32_0 : i32, i32
  }
  func.func @transform_3(%arg0: i32) -> (i32, i32) {
    %c0_i32 = arith.constant 0 : i32
    %c0_i32_0 = arith.constant 0 : i32
    %c0_i32_1 = arith.constant 0 : i32
    return %c0_i32, %c0_i32_0 : i32, i32
  }
  func.func @transform_4(%arg0: i32) -> (i32, i32) {
    %c0_i32 = arith.constant 0 : i32
    %c0_i32_0 = arith.constant 0 : i32
    %c0_i32_1 = arith.constant 0 : i32
    return %c0_i32, %c0_i32_0 : i32, i32
  }
  func.func @transform_5(%arg0: i32) -> (i32, i32) {
    %c0_i32 = arith.constant 0 : i32
    %c0_i32_0 = arith.constant 0 : i32
    %c0_i32_1 = arith.constant 0 : i32
    return %c0_i32, %c0_i32_0 : i32, i32
  }
  func.func @transform_6(%arg0: i32) -> (i32, i32) {
    %c0_i32 = arith.constant 0 : i32
    %c0_i32_0 = arith.constant 0 : i32
    return %arg0, %c0_i32 : i32, i32
  }
}

</mosaic_0001>

<llo_original>
// kernel: mefg_forward.1
$region0: #{mefg_forward.1}
  #allocation0 [shape = 'u32[]', space=smem, size = 0x4, offset = 0x4, fixed_abs, tag = 'smem constant byte address 0x4 - core index']
  #allocation1 [shape = 'u32[144,128]{1,0:T(1,128)}', space=vmem, size = 0x12000, scoped, tag = 'internal scratch']
  %s0 = inlined_call_operand.vmem [shape: f32[1024,24], index: 0, kind: input, shape index: {}]
  %s1 = inlined_call_operand.vmem [shape: f32[1024,64], index: 1, kind: input, shape index: {}]
  %s2 = inlined_call_operand.vmem [shape: f32[24,128], index: 2, kind: input, shape index: {}]
  %s3 = inlined_call_operand.vmem [shape: f32[64,128], index: 3, kind: input, shape index: {}]
  %s4 = inlined_call_operand.vmem [shape: f32[1,128], index: 4, kind: input, shape index: {}]
  %s5 = inlined_call_operand.vmem [shape: f32[1,128], index: 5, kind: input, shape index: {}]
  %s6 = inlined_call_operand.vmem [shape: f32[1024,128], index: 6, kind: output, shape index: {}]
  %s7 = sld [smem:[#allocation0]]
  $region57: #{mefg_forward.1} parent=0
    _
  %s9 = ssub.s32 1, %s7
  %s10 = scalar_select 0, %s9, %s7
  loop: start=0, step=1, limit=6
  $region2: #{mefg_forward.1} parent=0 // loop_pre_header
    _
  $region3: #{mefg_forward.1} parent=0 // loop_header
    %s12 = sphi 0, %s16
    %p13 = scmp.ge.s32.totalorder %s12, 6
    %s22 = sphi 0, %s24
    %s25 = sphi 0, %s22
    %s26 = sphi 0, %s25
    %s42 = sphi 0, %s26
    %s48 = sphi 0, %s50
    %s51 = sphi 0, %s48
    %s52 = sphi 0, %s51
    %s68 = sphi 0, %s52
    %s72 = sphi 0, %s72
    %s74 = sphi 0, %s72
    %s75 = sphi 0, %s74
    %s89 = sphi 0, %s75
    %s93 = sphi 0, %s93
    %s95 = sphi 0, %s93
    %s96 = sphi 0, %s95
    %s110 = sphi 0, %s96
    %s114 = sphi 0, %s114
    %s116 = sphi 0, %s114
    %s117 = sphi 0, %s116
    %s131 = sphi 0, %s117
    %s135 = sphi 0, %s135
    %s137 = sphi 0, %s135
    %s138 = sphi 0, %s137
    %s152 = sphi 0, %s138
    %s158 = sphi 0, %s160
    %s161 = sphi 0, %s158
    %s162 = sphi 0, %s161
    %s178 = sphi 0, %s162
  $region4: #{mefg_forward.1} parent=0 // loop_header_branch
    %15 = sbr.rel (%p13) target = $region8
  $region5: #{mefg_forward.1} parent=0 // loop_body
    %s17 = ssub.s32 %s12, 1
    %s18 = ssub.s32 %s12, 2
    %s19 = sadd.s32 %s12, 1
    %s20 = ssub.s32 %s12, %s19
    %p21 = scmp.eq.s32.totalorder %s20, 0
    %s23 = sadd.s32 %s22, 1
    %s24 = scalar_select %p21, %s22, %s23
    %p27 = pneg %p21
    %p28 = scmp.eq.s32.totalorder %s12, 3
    %p29 = por %p27, %p28
    %p30 = scmp.ne.s32.totalorder %s22, %s25
    %p31 = scmp.eq.s32.totalorder %s12, 0
    %p32 = por %p30, %p31
    %p33 = scmp.ne.s32.totalorder %s22, %s25
    %p34 = scmp.eq.s32.totalorder %s17, 3
    %p35 = por %p33, %p34
    %p36 = scmp.ne.s32.totalorder %s25, %s26
    %p37 = scmp.eq.s32.totalorder %s17, 0
    %p38 = por %p36, %p37
    %p39 = scmp.ne.s32.totalorder %s25, %s26
    %p40 = scmp.eq.s32.totalorder %s18, 3
    %p41 = por %p39, %p40
    %p43 = scmp.ne.s32.totalorder %s26, %s42
    %p44 = scmp.eq.s32.totalorder %s18, 0
    %p45 = por %p43, %p44
    %s46 = ssub.s32 %s12, %s19
    %p47 = scmp.eq.s32.totalorder %s46, 0
    %s49 = sadd.s32 %s48, 1
    %s50 = scalar_select %p47, %s48, %s49
    %p53 = pneg %p47
    %p54 = scmp.eq.s32.totalorder %s12, 3
    %p55 = por %p53, %p54
    %p56 = scmp.ne.s32.totalorder %s48, %s51
    %p57 = scmp.eq.s32.totalorder %s12, 0
    %p58 = por %p56, %p57
    %p59 = scmp.ne.s32.totalorder %s48, %s51
    %p60 = scmp.eq.s32.totalorder %s17, 3
    %p61 = por %p59, %p60
    %p62 = scmp.ne.s32.totalorder %s51, %s52
    %p63 = scmp.eq.s32.totalorder %s17, 0
    %p64 = por %p62, %p63
    %p65 = scmp.ne.s32.totalorder %s51, %s52
    %p66 = scmp.eq.s32.totalorder %s18, 3
    %p67 = por %p65, %p66
    %p69 = scmp.ne.s32.totalorder %s52, %s68
    %p70 = scmp.eq.s32.totalorder %s18, 0
    %p71 = por %p69, %p70
    %s73 = sadd.s32 %s72, 1
    %p76 = scmp.eq.s32.totalorder %s12, 3
    %p77 = scmp.ne.s32.totalorder %s72, %s74
    %p78 = scmp.eq.s32.totalorder %s12, 0
    %p79 = por %p77, %p78
    %p80 = scmp.ne.s32.totalorder %s72, %s74
    %p81 = scmp.eq.s32.totalorder %s17, 3
    %p82 = por %p80, %p81
    %p83 = scmp.ne.s32.totalorder %s74, %s75
    %p84 = scmp.eq.s32.totalorder %s17, 0
    %p85 = por %p83, %p84
    %p86 = scmp.ne.s32.totalorder %s74, %s75
    %p87 = scmp.eq.s32.totalorder %s18, 3
    %p88 = por %p86, %p87
    %p90 = scmp.ne.s32.totalorder %s75, %s89
    %p91 = scmp.eq.s32.totalorder %s18, 0
    %p92 = por %p90, %p91
    %s94 = sadd.s32 %s93, 1
    %p97 = scmp.eq.s32.totalorder %s12, 3
    %p98 = scmp.ne.s32.totalorder %s93, %s95
    %p99 = scmp.eq.s32.totalorder %s12, 0
    %p100 = por %p98, %p99
    %p101 = scmp.ne.s32.totalorder %s93, %s95
    %p102 = scmp.eq.s32.totalorder %s17, 3
    %p103 = por %p101, %p102
    %p104 = scmp.ne.s32.totalorder %s95, %s96
    %p105 = scmp.eq.s32.totalorder %s17, 0
    %p106 = por %p104, %p105
    %p107 = scmp.ne.s32.totalorder %s95, %s96
    %p108 = scmp.eq.s32.totalorder %s18, 3
    %p109 = por %p107, %p108
    %p111 = scmp.ne.s32.totalorder %s96, %s110
    %p112 = scmp.eq.s32.totalorder %s18, 0
    %p113 = por %p111, %p112
    %s115 = sadd.s32 %s114, 1
    %p118 = scmp.eq.s32.totalorder %s12, 3
    %p119 = scmp.ne.s32.totalorder %s114, %s116
    %p120 = scmp.eq.s32.totalorder %s12, 0
    %p121 = por %p119, %p120
    %p122 = scmp.ne.s32.totalorder %s114, %s116
    %p123 = scmp.eq.s32.totalorder %s17, 3
    %p124 = por %p122, %p123
    %p125 = scmp.ne.s32.totalorder %s116, %s117
    %p126 = scmp.eq.s32.totalorder %s17, 0
    %p127 = por %p125, %p126
    %p128 = scmp.ne.s32.totalorder %s116, %s117
    %p129 = scmp.eq.s32.totalorder %s18, 3
    %p130 = por %p128, %p129
    %p132 = scmp.ne.s32.totalorder %s117, %s131
    %p133 = scmp.eq.s32.totalorder %s18, 0
    %p134 = por %p132, %p133
    %s136 = sadd.s32 %s135, 1
    %p139 = scmp.eq.s32.totalorder %s12, 3
    %p140 = scmp.ne.s32.totalorder %s135, %s137
    %p141 = scmp.eq.s32.totalorder %s12, 0
    %p142 = por %p140, %p141
    %p143 = scmp.ne.s32.totalorder %s135, %s137
    %p144 = scmp.eq.s32.totalorder %s17, 3
    %p145 = por %p143, %p144
    %p146 = scmp.ne.s32.totalorder %s137, %s138
    %p147 = scmp.eq.s32.totalorder %s17, 0
    %p148 = por %p146, %p147
    %p149 = scmp.ne.s32.totalorder %s137, %s138
    %p150 = scmp.eq.s32.totalorder %s18, 3
    %p151 = por %p149, %p150
    %p153 = scmp.ne.s32.totalorder %s138, %s152
    %p154 = scmp.eq.s32.totalorder %s18, 0
    %p155 = por %p153, %p154
    %s156 = ssub.s32 %s12, %s19
    %p157 = scmp.eq.s32.totalorder %s156, 0
    %s159 = sadd.s32 %s158, 1
    %s160 = scalar_select %p157, %s158, %s159
    %p163 = pneg %p157
    %p164 = scmp.eq.s32.totalorder %s12, 3
    %p165 = por %p163, %p164
    %p166 = scmp.ne.s32.totalorder %s158, %s161
    %p167 = scmp.eq.s32.totalorder %s12, 0
    %p168 = por %p166, %p167
    %p169 = scmp.ne.s32.totalorder %s158, %s161
    %p170 = scmp.eq.s32.totalorder %s17, 3
    %p171 = por %p169, %p170
    %p172 = scmp.ne.s32.totalorder %s161, %s162
    %p173 = scmp.eq.s32.totalorder %s17, 0
    %p174 = por %p172, %p173
    %p175 = scmp.ne.s32.totalorder %s161, %s162
    %p176 = scmp.eq.s32.totalorder %s18, 3
    %p177 = por %p175, %p176
    %p179 = scmp.ne.s32.totalorder %s162, %s178
    %p180 = scmp.eq.s32.totalorder %s18, 0
    %p181 = por %p179, %p180
    %p182 = scmp.le.s32.totalorder 1, %s12
    %p183 = scmp.lt.s32.totalorder %s12, 5
    %p184 = pnand %p182, %p183
    %p185 = pneg %p184
    // Predicated region
    $region9: #{mefg_forward.1} parent=5 // pred_check
      _
    $region10: #{mefg_forward.1} parent=5 // pred_check_branch
      %187 = sbr.rel (%p184) target = $region12
    $region11: #{mefg_forward.1} parent=5 // pred_region
      %s188 = ssub.s32 %s12, 1
      // Predicated region
      $region13: #{mefg_forward.1} parent=11 // pred_check
        %p189 = pneg %p85
      $region14: #{mefg_forward.1} parent=11 // pred_check_branch
        %191 = sbr.rel (%p189) target = $region16
      $region15: #{mefg_forward.1} parent=11 // pred_region
        _
      $region16: #{mefg_forward.1} parent=11 // pred_fallthru
        _
      // Predicated region
      $region17: #{mefg_forward.1} parent=11 // pred_check
        %p192 = pneg %p106
      $region18: #{mefg_forward.1} parent=11 // pred_check_branch
        %194 = sbr.rel (%p192) target = $region20
      $region19: #{mefg_forward.1} parent=11 // pred_region
        _
      $region20: #{mefg_forward.1} parent=11 // pred_fallthru
        _
      // Predicated region
      $region21: #{mefg_forward.1} parent=11 // pred_check
        %p195 = pneg %p127
      $region22: #{mefg_forward.1} parent=11 // pred_check_branch
        %197 = sbr.rel (%p195) target = $region24
      $region23: #{mefg_forward.1} parent=11 // pred_region
        _
      $region24: #{mefg_forward.1} parent=11 // pred_fallthru
        _
      // Predicated region
      $region25: #{mefg_forward.1} parent=11 // pred_check
        %p198 = pneg %p148
      $region26: #{mefg_forward.1} parent=11 // pred_check_branch
        %200 = sbr.rel (%p198) target = $region28
      $region27: #{mefg_forward.1} parent=11 // pred_region
        _
      $region28: #{mefg_forward.1} parent=11 // pred_fallthru
        _
    $region12: #{mefg_forward.1} parent=5 // pred_fallthru
      _
    %p201 = scmp.lt.s32.totalorder %s12, 4
    // Predicated region
    $region29: #{mefg_forward.1} parent=5 // pred_check
      %p202 = pneg %p201
    $region30: #{mefg_forward.1} parent=5 // pred_check_branch
      %204 = sbr.rel (%p202) target = $region32
    $region31: #{mefg_forward.1} parent=5 // pred_region
      // Predicated region
      $region33: #{mefg_forward.1} parent=31 // pred_check
        %p205 = pneg %p32
      $region34: #{mefg_forward.1} parent=31 // pred_check_branch
        %207 = sbr.rel (%p205) target = $region36
      $region35: #{mefg_forward.1} parent=31 // pred_region
        %s208 = smul.u32 32, %s12
        %p209 = scmp.lt.s32.totalorder %s208, 127
        %s210 = scalar_select %p209, %s208, 127
        %s211 = smul.addr %s210, 8
        %s212 = scalar_lea.vmem %s0, %s211
        %s213 = smul.u32 32, %s12
      $region36: #{mefg_forward.1} parent=31 // pred_fallthru
        _
      // Predicated region
      $region37: #{mefg_forward.1} parent=31 // pred_check
        %p214 = pneg %p58
      $region38: #{mefg_forward.1} parent=31 // pred_check_branch
        %216 = sbr.rel (%p214) target = $region40
      $region39: #{mefg_forward.1} parent=31 // pred_region
        %s217 = smul.u32 32, %s12
        %p218 = scmp.lt.s32.totalorder %s217, 127
        %s219 = scalar_select %p218, %s217, 127
        %s220 = smul.addr %s219, 8
        %s221 = scalar_lea.vmem %s1, %s220
        %s222 = smul.u32 32, %s12
      $region40: #{mefg_forward.1} parent=31 // pred_fallthru
        _
    $region32: #{mefg_forward.1} parent=5 // pred_fallthru
      _
    %p223 = scmp.le.s32.totalorder 1, %s12
    %p224 = scmp.lt.s32.totalorder %s12, 5
    %p225 = pnand %p223, %p224
    %p226 = pneg %p225
    // Predicated region
    $region41: #{mefg_forward.1} parent=5 // pred_check
      _
    $region42: #{mefg_forward.1} parent=5 // pred_check_branch
      %228 = sbr.rel (%p225) target = $region44
    $region43: #{mefg_forward.1} parent=5 // pred_region
      %s229 = ssub.s32 %s12, 1
      %s230 = smul.u32 32, %s17
      %p231 = scmp.lt.s32.totalorder %s230, 127
      %s232 = scalar_select %p231, %s230, 127
      %s233 = smul.addr %s232, 8
      %s234 = scalar_lea.vmem %s0, %s233
      %p235 = pneg %p38
      %p236 = pneg %p35
      %s237 = smul.u32 32, %s17
      %p238 = scmp.lt.s32.totalorder %s237, 127
      %s239 = scalar_select %p238, %s237, 127
      %s240 = smul.addr %s239, 8
      %s241 = scalar_lea.vmem %s1, %s240
      %p242 = pneg %p64
      %p243 = pneg %p61
      %p244 = pneg %p85
      %p245 = pneg %p82
      %p246 = pneg %p106
      %p247 = pneg %p103
      %p248 = pneg %p127
      %p249 = pneg %p124
      %p250 = pneg %p148
      %p251 = pneg %p145
      %p252 = pneg %p174
      %p253 = pneg %p171
      %s254 = smul.u32 32, %s17
      %p255 = scmp.lt.s32.totalorder %s254, 127
      %s256 = scalar_select %p255, %s254, 127
      %s257 = smul.addr %s256, 8
      %s258 = scalar_lea.vmem %s6, %s257
      %s259 = smul.u32 32, %s17
      %p260 = scmp.lt.s32.totalorder %s259, 127
      %s261 = scalar_select %p260, %s259, 127
      %s262 = smul.addr %s261, 8
      %s263 = scalar_lea.vmem %s0, %s262
      %s264 = smul.u32 32, %s17
      %s265 = smul.u32 32, %s17
      %p266 = scmp.lt.s32.totalorder %s265, 127
      %s267 = scalar_select %p266, %s265, 127
      %s268 = smul.addr %s267, 8
      %s269 = scalar_lea.vmem %s1, %s268
      %s270 = smul.u32 32, %s17
      %s271 = smul.u32 32, %s17
      %p272 = scmp.lt.s32.totalorder %s271, 127
      %s273 = scalar_select %p272, %s271, 127
      %s274 = smul.addr %s273, 8
      %s275 = scalar_lea.vmem %s6, %s274
      %s276 = smul.u32 32, %s17
      %v277 = vld [vmem:[%s263] sm:$0xff]
      %v278 = vld [vmem:[%s263 + $0x8] sm:$0xff]
      %v279 = vld [vmem:[%s263 + $0x10] sm:$0xff]
      %v280 = vld [vmem:[%s263 + $0x18] sm:$0xff]
      %v281 = vld [vmem:[%s263 + $0x20] sm:$0xff]
      %v282 = vld [vmem:[%s263 + $0x28] sm:$0xff]
      %v283 = vld [vmem:[%s263 + $0x30] sm:$0xff]
      %v284 = vld [vmem:[%s263 + $0x38] sm:$0xff]
      %v285 = vld [vmem:[%s263 + $0x40] sm:$0xff]
      %v286 = vld [vmem:[%s263 + $0x48] sm:$0xff]
      %v287 = vld [vmem:[%s263 + $0x50] sm:$0xff]
      %v288 = vld [vmem:[%s263 + $0x58] sm:$0xff]
      %v289 = vld [vmem:[%s263 + $0x60] sm:$0xff]
      %v290 = vld [vmem:[%s263 + $0x68] sm:$0xff]
      %v291 = vld [vmem:[%s263 + $0x70] sm:$0xff]
      %v292 = vld [vmem:[%s263 + $0x78] sm:$0xff]
      %v293 = vld [vmem:[%s263 + $0x80] sm:$0xff]
      %v294 = vld [vmem:[%s263 + $0x88] sm:$0xff]
      %v295 = vld [vmem:[%s263 + $0x90] sm:$0xff]
      %v296 = vld [vmem:[%s263 + $0x98] sm:$0xff]
      %v297 = vld [vmem:[%s263 + $0xa0] sm:$0xff]
      %v298 = vld [vmem:[%s263 + $0xa8] sm:$0xff]
      %v299 = vld [vmem:[%s263 + $0xb0] sm:$0xff]
      %v300 = vld [vmem:[%s263 + $0xb8] sm:$0xff]
      %v301 = vld [vmem:[%s263 + $0xc0] sm:$0xff]
      %v302 = vld [vmem:[%s263 + $0xc8] sm:$0xff]
      %v303 = vld [vmem:[%s263 + $0xd0] sm:$0xff]
      %v304 = vld [vmem:[%s263 + $0xd8] sm:$0xff]
      %v305 = vld [vmem:[%s263 + $0xe0] sm:$0xff]
      %v306 = vld [vmem:[%s263 + $0xe8] sm:$0xff]
      %v307 = vld [vmem:[%s263 + $0xf0] sm:$0xff]
      %v308 = vld [vmem:[%s263 + $0xf8] sm:$0xff]
      %v309 = vld [vmem:[%s2] sm:$0xff]
      %v310 = vld [vmem:[%s2 + $0x8] sm:$0xff]
      %v311 = vld [vmem:[%s2 + $0x10] sm:$0xff]
      %v312 = vld [vmem:[%s269] sm:$0xff]
      %v313 = vld [vmem:[%s269 + $0x8] sm:$0xff]
      %v314 = vld [vmem:[%s269 + $0x10] sm:$0xff]
      %v315 = vld [vmem:[%s269 + $0x18] sm:$0xff]
      %v316 = vld [vmem:[%s269 + $0x20] sm:$0xff]
      %v317 = vld [vmem:[%s269 + $0x28] sm:$0xff]
      %v318 = vld [vmem:[%s269 + $0x30] sm:$0xff]
      %v319 = vld [vmem:[%s269 + $0x38] sm:$0xff]
      %v320 = vld [vmem:[%s269 + $0x40] sm:$0xff]
      %v321 = vld [vmem:[%s269 + $0x48] sm:$0xff]
      %v322 = vld [vmem:[%s269 + $0x50] sm:$0xff]
      %v323 = vld [vmem:[%s269 + $0x58] sm:$0xff]
      %v324 = vld [vmem:[%s269 + $0x60] sm:$0xff]
      %v325 = vld [vmem:[%s269 + $0x68] sm:$0xff]
      %v326 = vld [vmem:[%s269 + $0x70] sm:$0xff]
      %v327 = vld [vmem:[%s269 + $0x78] sm:$0xff]
      %v328 = vld [vmem:[%s269 + $0x80] sm:$0xff]
      %v329 = vld [vmem:[%s269 + $0x88] sm:$0xff]
      %v330 = vld [vmem:[%s269 + $0x90] sm:$0xff]
      %v331 = vld [vmem:[%s269 + $0x98] sm:$0xff]
      %v332 = vld [vmem:[%s269 + $0xa0] sm:$0xff]
      %v333 = vld [vmem:[%s269 + $0xa8] sm:$0xff]
      %v334 = vld [vmem:[%s269 + $0xb0] sm:$0xff]
      %v335 = vld [vmem:[%s269 + $0xb8] sm:$0xff]
      %v336 = vld [vmem:[%s269 + $0xc0] sm:$0xff]
      %v337 = vld [vmem:[%s269 + $0xc8] sm:$0xff]
      %v338 = vld [vmem:[%s269 + $0xd0] sm:$0xff]
      %v339 = vld [vmem:[%s269 + $0xd8] sm:$0xff]
      %v340 = vld [vmem:[%s269 + $0xe0] sm:$0xff]
      %v341 = vld [vmem:[%s269 + $0xe8] sm:$0xff]
      %v342 = vld [vmem:[%s269 + $0xf0] sm:$0xff]
      %v343 = vld [vmem:[%s269 + $0xf8] sm:$0xff]
      %v344 = vld [vmem:[%s3] sm:$0xff]
      %v345 = vld [vmem:[%s3 + $0x8] sm:$0xff]
      %v346 = vld [vmem:[%s3 + $0x10] sm:$0xff]
      %v347 = vld [vmem:[%s3 + $0x18] sm:$0xff]
      %v348 = vld [vmem:[%s3 + $0x20] sm:$0xff]
      %v349 = vld [vmem:[%s3 + $0x28] sm:$0xff]
      %v350 = vld [vmem:[%s3 + $0x30] sm:$0xff]
      %v351 = vld [vmem:[%s3 + $0x38] sm:$0xff]
      %vm352 = vcmask 523264
      %v354 = vsel %vm352, %v312, 0
      %v357 = vsel %vm352, %v313, 0
      %v360 = vsel %vm352, %v314, 0
      %v363 = vsel %vm352, %v315, 0
      %v366 = vsel %vm352, %v316, 0
      %v369 = vsel %vm352, %v317, 0
      %v372 = vsel %vm352, %v318, 0
      %v375 = vsel %vm352, %v319, 0
      %v378 = vsel %vm352, %v320, 0
      %v381 = vsel %vm352, %v321, 0
      %v384 = vsel %vm352, %v322, 0
      %v387 = vsel %vm352, %v323, 0
      %v390 = vsel %vm352, %v324, 0
      %v393 = vsel %vm352, %v325, 0
      %v396 = vsel %vm352, %v326, 0
      %v399 = vsel %vm352, %v327, 0
      %v402 = vsel %vm352, %v328, 0
      %v405 = vsel %vm352, %v329, 0
      %v408 = vsel %vm352, %v330, 0
      %v411 = vsel %vm352, %v331, 0
      %v414 = vsel %vm352, %v332, 0
      %v417 = vsel %vm352, %v333, 0
      %v420 = vsel %vm352, %v334, 0
      %v423 = vsel %vm352, %v335, 0
      %v426 = vsel %vm352, %v336, 0
      %v429 = vsel %vm352, %v337, 0
      %v432 = vsel %vm352, %v338, 0
      %v435 = vsel %vm352, %v339, 0
      %v438 = vsel %vm352, %v340, 0
      %v441 = vsel %vm352, %v341, 0
      %v444 = vsel %vm352, %v342, 0
      %v447 = vsel %vm352, %v343, 0
      %449 = vmatprep.subr.mxu0 0.0
      %450 = vmatpush1.msra.mxu0 0.0
      %451 = vmatprep.subr.mxu0 0.0
      %452 = vmatpush1.msra.mxu0 0.0
      %453 = vmatprep.subr.mxu0 0.0
      %454 = vmatpush1.msra.mxu0 0.0
      %455 = vmatprep.subr.mxu0 0.0
      %456 = vmatpush1.msra.mxu0 0.0
      %457 = vmatprep.subr.mxu0 0.0
      %458 = vmatpush1.msra.mxu0 0.0
      %459 = vmatprep.subr.mxu0 0.0
      %460 = vmatpush1.msra.mxu0 0.0
      %461 = vmatprep.subr.mxu0 0.0
      %462 = vmatpush1.msra.mxu0 0.0
      %463 = vmatprep.subr.mxu0 0.0
      %464 = vmatpush1.msra.mxu0 0.0
      %465 = vmatprep.subr.mxu0 0.0
      %466 = vmatpush1.msra.mxu0 %v351
      %467 = vmatprep.subr.mxu0 0.0
      %468 = vmatpush1.msra.mxu0 %v350
      %469 = vmatprep.subr.mxu0 0.0
      %470 = vmatpush1.msra.mxu0 %v349
      %471 = vmatprep.subr.mxu0 0.0
      %472 = vmatpush1.msra.mxu0 %v348
      %473 = vmatprep.subr.mxu0 0.0
      %474 = vmatpush1.msra.mxu0 %v347
      %475 = vmatprep.subr.mxu0 0.0
      %476 = vmatpush1.msra.mxu0 %v346
      %477 = vmatprep.subr.mxu0 0.0
      %478 = vmatpush1.msra.mxu0 %v345
      %479 = vmatprep.subr.mxu0 0.0
      %480 = vmatpush1.msra.mxu0 %v344
      %481 = vmatprep.subr.mxu0 0.0
      %482 = vmatpush2.msra.mxu0 0.0
      %483 = vmatprep.subr.mxu0 0.0
      %484 = vmatpush2.msra.mxu0 0.0
      %485 = vmatprep.subr.mxu0 0.0
      %486 = vmatpush2.msra.mxu0 0.0
      %487 = vmatprep.subr.mxu0 0.0
      %488 = vmatpush2.msra.mxu0 0.0
      %489 = vmatprep.subr.mxu0 0.0
      %490 = vmatpush2.msra.mxu0 0.0
      %491 = vmatprep.subr.mxu0 0.0
      %492 = vmatpush2.msra.mxu0 0.0
      %493 = vmatprep.subr.mxu0 0.0
      %494 = vmatpush2.msra.mxu0 0.0
      %495 = vmatprep.subr.mxu0 0.0
      %496 = vmatpush2.msra.mxu0 0.0
      %497 = vmatprep.subr.mxu0 0.0
      %498 = vmatpush2.msra.mxu0 0.0
      %499 = vmatprep.subr.mxu0 0.0
      %500 = vmatpush2.msra.mxu0 0.0
      %501 = vmatprep.subr.mxu0 0.0
      %502 = vmatpush2.msra.mxu0 0.0
      %503 = vmatprep.subr.mxu0 0.0
      %504 = vmatpush2.msra.mxu0 0.0
      %505 = vmatprep.subr.mxu0 0.0
      %506 = vmatpush2.msra.mxu0 0.0
      %507 = vmatprep.subr.mxu0 0.0
      %508 = vmatpush2.msra.mxu0 0.0
      %509 = vmatprep.subr.mxu0 0.0
      %510 = vmatpush2.msra.mxu0 0.0
      %511 = vmatprep.subr.mxu0 0.0
      %512 = vmatpush2.msra.mxu0 0.0
      %513 = vmatprep.mubr.f32.mxu0 0.0
      %514 = vmatmul.mubr.f32.gmra.mxu0 %v354
      %v515 = vpop.f32.mrf.mxu0
      %v516 = vadd.f32 0.0, %v515
      %v517 = vpop.f32.mrf.mxu0
      %518 = vmatprep.mubr.f32.mxu0 0.0
      %519 = vmatmul.mubr.f32.gmra.mxu0 %v357
      %v520 = vpop.f32.mrf.mxu0
      %v521 = vadd.f32 0.0, %v520
      %v522 = vpop.f32.mrf.mxu0
      %523 = vmatprep.mubr.f32.mxu0 0.0
      %524 = vmatmul.mubr.f32.gmra.mxu0 %v360
      %v525 = vpop.f32.mrf.mxu0
      %v526 = vadd.f32 0.0, %v525
      %v527 = vpop.f32.mrf.mxu0
      %528 = vmatprep.mubr.f32.mxu0 0.0
      %529 = vmatmul.mubr.f32.gmra.mxu0 %v363
      %v530 = vpop.f32.mrf.mxu0
      %v531 = vadd.f32 0.0, %v530
      %v532 = vpop.f32.mrf.mxu0
      %533 = vmatprep.mubr.f32.mxu0 0.0
      %534 = vmatmul.mubr.f32.gmra.mxu0 %v366
      %v535 = vpop.f32.mrf.mxu0
      %v536 = vadd.f32 0.0, %v535
      %v537 = vpop.f32.mrf.mxu0
      %538 = vmatprep.mubr.f32.mxu0 0.0
      %539 = vmatmul.mubr.f32.gmra.mxu0 %v369
      %v540 = vpop.f32.mrf.mxu0
      %v541 = vadd.f32 0.0, %v540
      %v542 = vpop.f32.mrf.mxu0
      %543 = vmatprep.mubr.f32.mxu0 0.0
      %544 = vmatmul.mubr.f32.gmra.mxu0 %v372
      %v545 = vpop.f32.mrf.mxu0
      %v546 = vadd.f32 0.0, %v545
      %v547 = vpop.f32.mrf.mxu0
      %548 = vmatprep.mubr.f32.mxu0 0.0
      %549 = vmatmul.mubr.f32.gmra.mxu0 %v375
      %v550 = vpop.f32.mrf.mxu0
      %v551 = vadd.f32 0.0, %v550
      %v552 = vpop.f32.mrf.mxu0
      %553 = vmatprep.mubr.f32.mxu0 0.0
      %554 = vmatmul.mubr.f32.gmra.mxu0 %v378
      %v555 = vpop.f32.mrf.mxu0
      %v556 = vadd.f32 0.0, %v555
      %v557 = vpop.f32.mrf.mxu0
      %558 = vmatprep.mubr.f32.mxu0 0.0
      %559 = vmatmul.mubr.f32.gmra.mxu0 %v381
      %v560 = vpop.f32.mrf.mxu0
      %v561 = vadd.f32 0.0, %v560
      %v562 = vpop.f32.mrf.mxu0
      %563 = vmatprep.mubr.f32.mxu0 0.0
      %564 = vmatmul.mubr.f32.gmra.mxu0 %v384
      %v565 = vpop.f32.mrf.mxu0
      %v566 = vadd.f32 0.0, %v565
      %v567 = vpop.f32.mrf.mxu0
      %568 = vmatprep.mubr.f32.mxu0 0.0
      %569 = vmatmul.mubr.f32.gmra.mxu0 %v387
      %v570 = vpop.f32.mrf.mxu0
      %v571 = vadd.f32 0.0, %v570
      %v572 = vpop.f32.mrf.mxu0
      %573 = vmatprep.mubr.f32.mxu0 0.0
      %574 = vmatmul.mubr.f32.gmra.mxu0 %v390
      %v575 = vpop.f32.mrf.mxu0
      %v576 = vadd.f32 0.0, %v575
      %v577 = vpop.f32.mrf.mxu0
      %578 = vmatprep.mubr.f32.mxu0 0.0
      %579 = vmatmul.mubr.f32.gmra.mxu0 %v393
      %v580 = vpop.f32.mrf.mxu0
      %v581 = vadd.f32 0.0, %v580
      %v582 = vpop.f32.mrf.mxu0
      %583 = vmatprep.mubr.f32.mxu0 0.0
      %584 = vmatmul.mubr.f32.gmra.mxu0 %v396
      %v585 = vpop.f32.mrf.mxu0
      %v586 = vadd.f32 0.0, %v585
      %v587 = vpop.f32.mrf.mxu0
      %588 = vmatprep.mubr.f32.mxu0 0.0
      %589 = vmatmul.mubr.f32.gmra.mxu0 %v399
      %v590 = vpop.f32.mrf.mxu0
      %v591 = vadd.f32 0.0, %v590
      %v592 = vpop.f32.mrf.mxu0
      %593 = vmatprep.mubr.f32.mxu0 0.0
      %594 = vmatmul.mubr.f32.gmra.mxu0 %v402
      %v595 = vpop.f32.mrf.mxu0
      %v596 = vadd.f32 0.0, %v595
      %v597 = vpop.f32.mrf.mxu0
      %598 = vmatprep.mubr.f32.mxu0 0.0
      %599 = vmatmul.mubr.f32.gmra.mxu0 %v405
      %v600 = vpop.f32.mrf.mxu0
      %v601 = vadd.f32 0.0, %v600
      %v602 = vpop.f32.mrf.mxu0
      %603 = vmatprep.mubr.f32.mxu0 0.0
      %604 = vmatmul.mubr.f32.gmra.mxu0 %v408
      %v605 = vpop.f32.mrf.mxu0
      %v606 = vadd.f32 0.0, %v605
      %v607 = vpop.f32.mrf.mxu0
      %608 = vmatprep.mubr.f32.mxu0 0.0
      %609 = vmatmul.mubr.f32.gmra.mxu0 %v411
      %v610 = vpop.f32.mrf.mxu0
      %v611 = vadd.f32 0.0, %v610
      %v612 = vpop.f32.mrf.mxu0
      %613 = vmatprep.mubr.f32.mxu0 0.0
      %614 = vmatmul.mubr.f32.gmra.mxu0 %v414
      %v615 = vpop.f32.mrf.mxu0
      %v616 = vadd.f32 0.0, %v615
      %v617 = vpop.f32.mrf.mxu0
      %618 = vmatprep.mubr.f32.mxu0 0.0
      %619 = vmatmul.mubr.f32.gmra.mxu0 %v417
      %v620 = vpop.f32.mrf.mxu0
      %v621 = vadd.f32 0.0, %v620
      %v622 = vpop.f32.mrf.mxu0
      %623 = vmatprep.mubr.f32.mxu0 0.0
      %624 = vmatmul.mubr.f32.gmra.mxu0 %v420
      %v625 = vpop.f32.mrf.mxu0
      %v626 = vadd.f32 0.0, %v625
      %v627 = vpop.f32.mrf.mxu0
      %628 = vmatprep.mubr.f32.mxu0 0.0
      %629 = vmatmul.mubr.f32.gmra.mxu0 %v423
      %v630 = vpop.f32.mrf.mxu0
      %v631 = vadd.f32 0.0, %v630
      %v632 = vpop.f32.mrf.mxu0
      %633 = vmatprep.mubr.f32.mxu0 0.0
      %634 = vmatmul.mubr.f32.gmra.mxu0 %v426
      %v635 = vpop.f32.mrf.mxu0
      %v636 = vadd.f32 0.0, %v635
      %v637 = vpop.f32.mrf.mxu0
      %638 = vmatprep.mubr.f32.mxu0 0.0
      %639 = vmatmul.mubr.f32.gmra.mxu0 %v429
      %v640 = vpop.f32.mrf.mxu0
      %v641 = vadd.f32 0.0, %v640
      %v642 = vpop.f32.mrf.mxu0
      %643 = vmatprep.mubr.f32.mxu0 0.0
      %644 = vmatmul.mubr.f32.gmra.mxu0 %v432
      %v645 = vpop.f32.mrf.mxu0
      %v646 = vadd.f32 0.0, %v645
      %v647 = vpop.f32.mrf.mxu0
      %648 = vmatprep.mubr.f32.mxu0 0.0
      %649 = vmatmul.mubr.f32.gmra.mxu0 %v435
      %v650 = vpop.f32.mrf.mxu0
      %v651 = vadd.f32 0.0, %v650
      %v652 = vpop.f32.mrf.mxu0
      %653 = vmatprep.mubr.f32.mxu0 0.0
      %654 = vmatmul.mubr.f32.gmra.mxu0 %v438
      %v655 = vpop.f32.mrf.mxu0
      %v656 = vadd.f32 0.0, %v655
      %v657 = vpop.f32.mrf.mxu0
      %658 = vmatprep.mubr.f32.mxu0 0.0
      %659 = vmatmul.mubr.f32.gmra.mxu0 %v441
      %v660 = vpop.f32.mrf.mxu0
      %v661 = vadd.f32 0.0, %v660
      %v662 = vpop.f32.mrf.mxu0
      %663 = vmatprep.mubr.f32.mxu0 0.0
      %664 = vmatmul.mubr.f32.gmra.mxu0 %v444
      %v665 = vpop.f32.mrf.mxu0
      %v666 = vadd.f32 0.0, %v665
      %v667 = vpop.f32.mrf.mxu0
      %668 = vmatprep.mubr.f32.mxu0 0.0
      %669 = vmatmul.mubr.f32.gmra.mxu0 %v447
      %v670 = vpop.f32.mrf.mxu0
      %v671 = vadd.f32 0.0, %v670
      %v672 = vpop.f32.mrf.mxu0
      %673 = vdwg.mxu0
      %vm674 = vcmask 195584
      %v676 = vsel %vm674, %v277, 0
      %v679 = vsel %vm674, %v278, 0
      %v682 = vsel %vm674, %v279, 0
      %v685 = vsel %vm674, %v280, 0
      %v688 = vsel %vm674, %v281, 0
      %v691 = vsel %vm674, %v282, 0
      %v694 = vsel %vm674, %v283, 0
      %v697 = vsel %vm674, %v284, 0
      %v700 = vsel %vm674, %v285, 0
      %v703 = vsel %vm674, %v286, 0
      %v706 = vsel %vm674, %v287, 0
      %v709 = vsel %vm674, %v288, 0
      %v712 = vsel %vm674, %v289, 0
      %v715 = vsel %vm674, %v290, 0
      %v718 = vsel %vm674, %v291, 0
      %v721 = vsel %vm674, %v292, 0
      %v724 = vsel %vm674, %v293, 0
      %v727 = vsel %vm674, %v294, 0
      %v730 = vsel %vm674, %v295, 0
      %v733 = vsel %vm674, %v296, 0
      %v736 = vsel %vm674, %v297, 0
      %v739 = vsel %vm674, %v298, 0
      %v742 = vsel %vm674, %v299, 0
      %v745 = vsel %vm674, %v300, 0
      %v748 = vsel %vm674, %v301, 0
      %v751 = vsel %vm674, %v302, 0
      %v754 = vsel %vm674, %v303, 0
      %v757 = vsel %vm674, %v304, 0
      %v760 = vsel %vm674, %v305, 0
      %v763 = vsel %vm674, %v306, 0
      %v766 = vsel %vm674, %v307, 0
      %v769 = vsel %vm674, %v308, 0
      %771 = vmatprep.subr.mxu0 0.0
      %772 = vmatpush1.msra.mxu0 0.0
      %773 = vmatprep.subr.mxu0 0.0
      %774 = vmatpush1.msra.mxu0 0.0
      %775 = vmatprep.subr.mxu0 0.0
      %776 = vmatpush1.msra.mxu0 0.0
      %777 = vmatprep.subr.mxu0 0.0
      %778 = vmatpush1.msra.mxu0 0.0
      %779 = vmatprep.subr.mxu0 0.0
      %780 = vmatpush1.msra.mxu0 0.0
      %781 = vmatprep.subr.mxu0 0.0
      %782 = vmatpush1.msra.mxu0 0.0
      %783 = vmatprep.subr.mxu0 0.0
      %784 = vmatpush1.msra.mxu0 0.0
      %785 = vmatprep.subr.mxu0 0.0
      %786 = vmatpush1.msra.mxu0 0.0
      %787 = vmatprep.subr.mxu0 0.0
      %788 = vmatpush1.msra.mxu0 0.0
      %789 = vmatprep.subr.mxu0 0.0
      %790 = vmatpush1.msra.mxu0 0.0
      %791 = vmatprep.subr.mxu0 0.0
      %792 = vmatpush1.msra.mxu0 0.0
      %793 = vmatprep.subr.mxu0 0.0
      %794 = vmatpush1.msra.mxu0 0.0
      %795 = vmatprep.subr.mxu0 0.0
      %796 = vmatpush1.msra.mxu0 0.0
      %797 = vmatprep.subr.mxu0 0.0
      %798 = vmatpush1.msra.mxu0 %v311
      %799 = vmatprep.subr.mxu0 0.0
      %800 = vmatpush1.msra.mxu0 %v310
      %801 = vmatprep.subr.mxu0 0.0
      %802 = vmatpush1.msra.mxu0 %v309
      %803 = vmatprep.subr.mxu0 0.0
      %804 = vmatpush2.msra.mxu0 0.0
      %805 = vmatprep.subr.mxu0 0.0
      %806 = vmatpush2.msra.mxu0 0.0
      %807 = vmatprep.subr.mxu0 0.0
      %808 = vmatpush2.msra.mxu0 0.0
      %809 = vmatprep.subr.mxu0 0.0
      %810 = vmatpush2.msra.mxu0 0.0
      %811 = vmatprep.subr.mxu0 0.0
      %812 = vmatpush2.msra.mxu0 0.0
      %813 = vmatprep.subr.mxu0 0.0
      %814 = vmatpush2.msra.mxu0 0.0
      %815 = vmatprep.subr.mxu0 0.0
      %816 = vmatpush2.msra.mxu0 0.0
      %817 = vmatprep.subr.mxu0 0.0
      %818 = vmatpush2.msra.mxu0 0.0
      %819 = vmatprep.subr.mxu0 0.0
      %820 = vmatpush2.msra.mxu0 0.0
      %821 = vmatprep.subr.mxu0 0.0
      %822 = vmatpush2.msra.mxu0 0.0
      %823 = vmatprep.subr.mxu0 0.0
      %824 = vmatpush2.msra.mxu0 0.0
      %825 = vmatprep.subr.mxu0 0.0
      %826 = vmatpush2.msra.mxu0 0.0
      %827 = vmatprep.subr.mxu0 0.0
      %828 = vmatpush2.msra.mxu0 0.0
      %829 = vmatprep.subr.mxu0 0.0
      %830 = vmatpush2.msra.mxu0 0.0
      %831 = vmatprep.subr.mxu0 0.0
      %832 = vmatpush2.msra.mxu0 0.0
      %833 = vmatprep.subr.mxu0 0.0
      %834 = vmatpush2.msra.mxu0 0.0
      %835 = vmatprep.mubr.f32.mxu0 0.0
      %836 = vmatmul.mubr.f32.gmra.mxu0 %v676
      %v837 = vpop.f32.mrf.mxu0
      %v838 = vadd.f32 %v516, %v837
      %v839 = vpop.f32.mrf.mxu0
      %840 = vmatprep.mubr.f32.mxu0 0.0
      %841 = vmatmul.mubr.f32.gmra.mxu0 %v679
      %v842 = vpop.f32.mrf.mxu0
      %v843 = vadd.f32 %v521, %v842
      %v844 = vpop.f32.mrf.mxu0
      %845 = vmatprep.mubr.f32.mxu0 0.0
      %846 = vmatmul.mubr.f32.gmra.mxu0 %v682
      %v847 = vpop.f32.mrf.mxu0
      %v848 = vadd.f32 %v526, %v847
      %v849 = vpop.f32.mrf.mxu0
      %850 = vmatprep.mubr.f32.mxu0 0.0
      %851 = vmatmul.mubr.f32.gmra.mxu0 %v685
      %v852 = vpop.f32.mrf.mxu0
      %v853 = vadd.f32 %v531, %v852
      %v854 = vpop.f32.mrf.mxu0
      %855 = vmatprep.mubr.f32.mxu0 0.0
      %856 = vmatmul.mubr.f32.gmra.mxu0 %v688
      %v857 = vpop.f32.mrf.mxu0
      %v858 = vadd.f32 %v536, %v857
      %v859 = vpop.f32.mrf.mxu0
      %860 = vmatprep.mubr.f32.mxu0 0.0
      %861 = vmatmul.mubr.f32.gmra.mxu0 %v691
      %v862 = vpop.f32.mrf.mxu0
      %v863 = vadd.f32 %v541, %v862
      %v864 = vpop.f32.mrf.mxu0
      %865 = vmatprep.mubr.f32.mxu0 0.0
      %866 = vmatmul.mubr.f32.gmra.mxu0 %v694
      %v867 = vpop.f32.mrf.mxu0
      %v868 = vadd.f32 %v546, %v867
      %v869 = vpop.f32.mrf.mxu0
      %870 = vmatprep.mubr.f32.mxu0 0.0
      %871 = vmatmul.mubr.f32.gmra.mxu0 %v697
      %v872 = vpop.f32.mrf.mxu0
      %v873 = vadd.f32 %v551, %v872
      %v874 = vpop.f32.mrf.mxu0
      %875 = vmatprep.mubr.f32.mxu0 0.0
      %876 = vmatmul.mubr.f32.gmra.mxu0 %v700
      %v877 = vpop.f32.mrf.mxu0
      %v878 = vadd.f32 %v556, %v877
      %v879 = vpop.f32.mrf.mxu0
      %880 = vmatprep.mubr.f32.mxu0 0.0
      %881 = vmatmul.mubr.f32.gmra.mxu0 %v703
      %v882 = vpop.f32.mrf.mxu0
      %v883 = vadd.f32 %v561, %v882
      %v884 = vpop.f32.mrf.mxu0
      %885 = vmatprep.mubr.f32.mxu0 0.0
      %886 = vmatmul.mubr.f32.gmra.mxu0 %v706
      %v887 = vpop.f32.mrf.mxu0
      %v888 = vadd.f32 %v566, %v887
      %v889 = vpop.f32.mrf.mxu0
      %890 = vmatprep.mubr.f32.mxu0 0.0
      %891 = vmatmul.mubr.f32.gmra.mxu0 %v709
      %v892 = vpop.f32.mrf.mxu0
      %v893 = vadd.f32 %v571, %v892
      %v894 = vpop.f32.mrf.mxu0
      %895 = vmatprep.mubr.f32.mxu0 0.0
      %896 = vmatmul.mubr.f32.gmra.mxu0 %v712
      %v897 = vpop.f32.mrf.mxu0
      %v898 = vadd.f32 %v576, %v897
      %v899 = vpop.f32.mrf.mxu0
      %900 = vmatprep.mubr.f32.mxu0 0.0
      %901 = vmatmul.mubr.f32.gmra.mxu0 %v715
      %v902 = vpop.f32.mrf.mxu0
      %v903 = vadd.f32 %v581, %v902
      %v904 = vpop.f32.mrf.mxu0
      %905 = vmatprep.mubr.f32.mxu0 0.0
      %906 = vmatmul.mubr.f32.gmra.mxu0 %v718
      %v907 = vpop.f32.mrf.mxu0
      %v908 = vadd.f32 %v586, %v907
      %v909 = vpop.f32.mrf.mxu0
      %910 = vmatprep.mubr.f32.mxu0 0.0
      %911 = vmatmul.mubr.f32.gmra.mxu0 %v721
      %v912 = vpop.f32.mrf.mxu0
      %v913 = vadd.f32 %v591, %v912
      %v914 = vpop.f32.mrf.mxu0
      %915 = vmatprep.mubr.f32.mxu0 0.0
      %916 = vmatmul.mubr.f32.gmra.mxu0 %v724
      %v917 = vpop.f32.mrf.mxu0
      %v918 = vadd.f32 %v596, %v917
      %v919 = vpop.f32.mrf.mxu0
      %920 = vmatprep.mubr.f32.mxu0 0.0
      %921 = vmatmul.mubr.f32.gmra.mxu0 %v727
      %v922 = vpop.f32.mrf.mxu0
      %v923 = vadd.f32 %v601, %v922
      %v924 = vpop.f32.mrf.mxu0
      %925 = vmatprep.mubr.f32.mxu0 0.0
      %926 = vmatmul.mubr.f32.gmra.mxu0 %v730
      %v927 = vpop.f32.mrf.mxu0
      %v928 = vadd.f32 %v606, %v927
      %v929 = vpop.f32.mrf.mxu0
      %930 = vmatprep.mubr.f32.mxu0 0.0
      %931 = vmatmul.mubr.f32.gmra.mxu0 %v733
      %v932 = vpop.f32.mrf.mxu0
      %v933 = vadd.f32 %v611, %v932
      %v934 = vpop.f32.mrf.mxu0
      %935 = vmatprep.mubr.f32.mxu0 0.0
      %936 = vmatmul.mubr.f32.gmra.mxu0 %v736
      %v937 = vpop.f32.mrf.mxu0
      %v938 = vadd.f32 %v616, %v937
      %v939 = vpop.f32.mrf.mxu0
      %940 = vmatprep.mubr.f32.mxu0 0.0
      %941 = vmatmul.mubr.f32.gmra.mxu0 %v739
      %v942 = vpop.f32.mrf.mxu0
      %v943 = vadd.f32 %v621, %v942
      %v944 = vpop.f32.mrf.mxu0
      %945 = vmatprep.mubr.f32.mxu0 0.0
      %946 = vmatmul.mubr.f32.gmra.mxu0 %v742
      %v947 = vpop.f32.mrf.mxu0
      %v948 = vadd.f32 %v626, %v947
      %v949 = vpop.f32.mrf.mxu0
      %950 = vmatprep.mubr.f32.mxu0 0.0
      %951 = vmatmul.mubr.f32.gmra.mxu0 %v745
      %v952 = vpop.f32.mrf.mxu0
      %v953 = vadd.f32 %v631, %v952
      %v954 = vpop.f32.mrf.mxu0
      %955 = vmatprep.mubr.f32.mxu0 0.0
      %956 = vmatmul.mubr.f32.gmra.mxu0 %v748
      %v957 = vpop.f32.mrf.mxu0
      %v958 = vadd.f32 %v636, %v957
      %v959 = vpop.f32.mrf.mxu0
      %960 = vmatprep.mubr.f32.mxu0 0.0
      %961 = vmatmul.mubr.f32.gmra.mxu0 %v751
      %v962 = vpop.f32.mrf.mxu0
      %v963 = vadd.f32 %v641, %v962
      %v964 = vpop.f32.mrf.mxu0
      %965 = vmatprep.mubr.f32.mxu0 0.0
      %966 = vmatmul.mubr.f32.gmra.mxu0 %v754
      %v967 = vpop.f32.mrf.mxu0
      %v968 = vadd.f32 %v646, %v967
      %v969 = vpop.f32.mrf.mxu0
      %970 = vmatprep.mubr.f32.mxu0 0.0
      %971 = vmatmul.mubr.f32.gmra.mxu0 %v757
      %v972 = vpop.f32.mrf.mxu0
      %v973 = vadd.f32 %v651, %v972
      %v974 = vpop.f32.mrf.mxu0
      %975 = vmatprep.mubr.f32.mxu0 0.0
      %976 = vmatmul.mubr.f32.gmra.mxu0 %v760
      %v977 = vpop.f32.mrf.mxu0
      %v978 = vadd.f32 %v656, %v977
      %v979 = vpop.f32.mrf.mxu0
      %980 = vmatprep.mubr.f32.mxu0 0.0
      %981 = vmatmul.mubr.f32.gmra.mxu0 %v763
      %v982 = vpop.f32.mrf.mxu0
      %v983 = vadd.f32 %v661, %v982
      %v984 = vpop.f32.mrf.mxu0
      %985 = vmatprep.mubr.f32.mxu0 0.0
      %986 = vmatmul.mubr.f32.gmra.mxu0 %v766
      %v987 = vpop.f32.mrf.mxu0
      %v988 = vadd.f32 %v666, %v987
      %v989 = vpop.f32.mrf.mxu0
      %990 = vmatprep.mubr.f32.mxu0 0.0
      %991 = vmatmul.mubr.f32.gmra.mxu0 %v769
      %v992 = vpop.f32.mrf.mxu0
      %v993 = vadd.f32 %v671, %v992
      %v994 = vpop.f32.mrf.mxu0
      %995 = vdwg.mxu0
      %v996 = vld [vmem:[%s4] sm:$0x1]
      %v998 = vlaneseq
      %v999 = vshrl.u32 %v998, 7
      %v1000 = vsub.s32 0, %v999
      %v1001 = vrot.slane %v996, %v1000
      %v1003 = vmul.f32 %v838, %v1001
      %v1004 = vmul.f32 %v843, %v1001
      %v1005 = vmul.f32 %v848, %v1001
      %v1006 = vmul.f32 %v853, %v1001
      %v1007 = vmul.f32 %v858, %v1001
      %v1008 = vmul.f32 %v863, %v1001
      %v1009 = vmul.f32 %v868, %v1001
      %v1010 = vmul.f32 %v873, %v1001
      %v1011 = vmul.f32 %v878, %v1001
      %v1012 = vmul.f32 %v883, %v1001
      %v1013 = vmul.f32 %v888, %v1001
      %v1014 = vmul.f32 %v893, %v1001
      %v1015 = vmul.f32 %v898, %v1001
      %v1016 = vmul.f32 %v903, %v1001
      %v1017 = vmul.f32 %v908, %v1001
      %v1018 = vmul.f32 %v913, %v1001
      %v1019 = vmul.f32 %v918, %v1001
      %v1020 = vmul.f32 %v923, %v1001
      %v1021 = vmul.f32 %v928, %v1001
      %v1022 = vmul.f32 %v933, %v1001
      %v1023 = vmul.f32 %v938, %v1001
      %v1024 = vmul.f32 %v943, %v1001
      %v1025 = vmul.f32 %v948, %v1001
      %v1026 = vmul.f32 %v953, %v1001
      %v1027 = vmul.f32 %v958, %v1001
      %v1028 = vmul.f32 %v963, %v1001
      %v1029 = vmul.f32 %v968, %v1001
      %v1030 = vmul.f32 %v973, %v1001
      %v1031 = vmul.f32 %v978, %v1001
      %v1032 = vmul.f32 %v983, %v1001
      %v1033 = vmul.f32 %v988, %v1001
      %v1034 = vmul.f32 %v993, %v1001
      %v1035 = vld [vmem:[%s5] sm:$0x1]
      %v1037 = vlaneseq
      %v1038 = vshrl.u32 %v1037, 7
      %v1039 = vsub.s32 0, %v1038
      %v1040 = vrot.slane %v1035, %v1039
      %v1042 = vadd.f32 %v1003, %v1040
      %v1043 = vadd.f32 %v1004, %v1040
      %v1044 = vadd.f32 %v1005, %v1040
      %v1045 = vadd.f32 %v1006, %v1040
      %v1046 = vadd.f32 %v1007, %v1040
      %v1047 = vadd.f32 %v1008, %v1040
      %v1048 = vadd.f32 %v1009, %v1040
      %v1049 = vadd.f32 %v1010, %v1040
      %v1050 = vadd.f32 %v1011, %v1040
      %v1051 = vadd.f32 %v1012, %v1040
      %v1052 = vadd.f32 %v1013, %v1040
      %v1053 = vadd.f32 %v1014, %v1040
      %v1054 = vadd.f32 %v1015, %v1040
      %v1055 = vadd.f32 %v1016, %v1040
      %v1056 = vadd.f32 %v1017, %v1040
      %v1057 = vadd.f32 %v1018, %v1040
      %v1058 = vadd.f32 %v1019, %v1040
      %v1059 = vadd.f32 %v1020, %v1040
      %v1060 = vadd.f32 %v1021, %v1040
      %v1061 = vadd.f32 %v1022, %v1040
      %v1062 = vadd.f32 %v1023, %v1040
      %v1063 = vadd.f32 %v1024, %v1040
      %v1064 = vadd.f32 %v1025, %v1040
      %v1065 = vadd.f32 %v1026, %v1040
      %v1066 = vadd.f32 %v1027, %v1040
      %v1067 = vadd.f32 %v1028, %v1040
      %v1068 = vadd.f32 %v1029, %v1040
      %v1069 = vadd.f32 %v1030, %v1040
      %v1070 = vadd.f32 %v1031, %v1040
      %v1071 = vadd.f32 %v1032, %v1040
      %v1072 = vadd.f32 %v1033, %v1040
      %v1073 = vadd.f32 %v1034, %v1040
      %v1074 = vmax.f32 %v1042, 0.0
      %v1075 = vmax.f32 %v1043, 0.0
      %v1076 = vmax.f32 %v1044, 0.0
      %v1077 = vmax.f32 %v1045, 0.0
      %v1078 = vmax.f32 %v1046, 0.0
      %v1079 = vmax.f32 %v1047, 0.0
      %v1080 = vmax.f32 %v1048, 0.0
      %v1081 = vmax.f32 %v1049, 0.0
      %v1082 = vmax.f32 %v1050, 0.0
      %v1083 = vmax.f32 %v1051, 0.0
      %v1084 = vmax.f32 %v1052, 0.0
      %v1085 = vmax.f32 %v1053, 0.0
      %v1086 = vmax.f32 %v1054, 0.0
      %v1087 = vmax.f32 %v1055, 0.0
      %v1088 = vmax.f32 %v1056, 0.0
      %v1089 = vmax.f32 %v1057, 0.0
      %v1090 = vmax.f32 %v1058, 0.0
      %v1091 = vmax.f32 %v1059, 0.0
      %v1092 = vmax.f32 %v1060, 0.0
      %v1093 = vmax.f32 %v1061, 0.0
      %v1094 = vmax.f32 %v1062, 0.0
      %v1095 = vmax.f32 %v1063, 0.0
      %v1096 = vmax.f32 %v1064, 0.0
      %v1097 = vmax.f32 %v1065, 0.0
      %v1098 = vmax.f32 %v1066, 0.0
      %v1099 = vmax.f32 %v1067, 0.0
      %v1100 = vmax.f32 %v1068, 0.0
      %v1101 = vmax.f32 %v1069, 0.0
      %v1102 = vmax.f32 %v1070, 0.0
      %v1103 = vmax.f32 %v1071, 0.0
      %v1104 = vmax.f32 %v1072, 0.0
      %v1105 = vmax.f32 %v1073, 0.0
      %1106 = vst [vmem:[%s275] sm:$0xff] %v1074
      %1107 = vst [vmem:[%s275 + $0x8] sm:$0xff] %v1075
      %1108 = vst [vmem:[%s275 + $0x10] sm:$0xff] %v1076
      %1109 = vst [vmem:[%s275 + $0x18] sm:$0xff] %v1077
      %1110 = vst [vmem:[%s275 + $0x20] sm:$0xff] %v1078
      %1111 = vst [vmem:[%s275 + $0x28] sm:$0xff] %v1079
      %1112 = vst [vmem:[%s275 + $0x30] sm:$0xff] %v1080
      %1113 = vst [vmem:[%s275 + $0x38] sm:$0xff] %v1081
      %1114 = vst [vmem:[%s275 + $0x40] sm:$0xff] %v1082
      %1115 = vst [vmem:[%s275 + $0x48] sm:$0xff] %v1083
      %1116 = vst [vmem:[%s275 + $0x50] sm:$0xff] %v1084
      %1117 = vst [vmem:[%s275 + $0x58] sm:$0xff] %v1085
      %1118 = vst [vmem:[%s275 + $0x60] sm:$0xff] %v1086
      %1119 = vst [vmem:[%s275 + $0x68] sm:$0xff] %v1087
      %1120 = vst [vmem:[%s275 + $0x70] sm:$0xff] %v1088
      %1121 = vst [vmem:[%s275 + $0x78] sm:$0xff] %v1089
      %1122 = vst [vmem:[%s275 + $0x80] sm:$0xff] %v1090
      %1123 = vst [vmem:[%s275 + $0x88] sm:$0xff] %v1091
      %1124 = vst [vmem:[%s275 + $0x90] sm:$0xff] %v1092
      %1125 = vst [vmem:[%s275 + $0x98] sm:$0xff] %v1093
      %1126 = vst [vmem:[%s275 + $0xa0] sm:$0xff] %v1094
      %1127 = vst [vmem:[%s275 + $0xa8] sm:$0xff] %v1095
      %1128 = vst [vmem:[%s275 + $0xb0] sm:$0xff] %v1096
      %1129 = vst [vmem:[%s275 + $0xb8] sm:$0xff] %v1097
      %1130 = vst [vmem:[%s275 + $0xc0] sm:$0xff] %v1098
      %1131 = vst [vmem:[%s275 + $0xc8] sm:$0xff] %v1099
      %1132 = vst [vmem:[%s275 + $0xd0] sm:$0xff] %v1100
      %1133 = vst [vmem:[%s275 + $0xd8] sm:$0xff] %v1101
      %1134 = vst [vmem:[%s275 + $0xe0] sm:$0xff] %v1102
      %1135 = vst [vmem:[%s275 + $0xe8] sm:$0xff] %v1103
      %1136 = vst [vmem:[%s275 + $0xf0] sm:$0xff] %v1104
      %1137 = vst [vmem:[%s275 + $0xf8] sm:$0xff] %v1105
      %s1138 = smul.u32 32, %s17
      %p1139 = scmp.lt.s32.totalorder %s1138, 127
      %s1140 = scalar_select %p1139, %s1138, 127
      %s1141 = smul.addr %s1140, 8
      %s1142 = scalar_lea.vmem %s6, %s1141
      // Predicated region
      $region45: #{mefg_forward.1} parent=43 // pred_check
        %p1143 = pneg %p171
      $region46: #{mefg_forward.1} parent=43 // pred_check_branch
        %1145 = sbr.rel (%p1143) target = $region48
      $region47: #{mefg_forward.1} parent=43 // pred_region
        %s1146 = smul.u32 32, %s17
      $region48: #{mefg_forward.1} parent=43 // pred_fallthru
        _
    $region44: #{mefg_forward.1} parent=5 // pred_fallthru
      _
    %p1147 = scmp.le.s32.totalorder 2, %s12
    // Predicated region
    $region49: #{mefg_forward.1} parent=5 // pred_check
      %p1148 = pneg %p1147
    $region50: #{mefg_forward.1} parent=5 // pred_check_branch
      %1150 = sbr.rel (%p1148) target = $region52
    $region51: #{mefg_forward.1} parent=5 // pred_region
      %s1151 = ssub.s32 %s12, 2
      // Predicated region
      $region53: #{mefg_forward.1} parent=51 // pred_check
        %p1152 = pneg %p177
      $region54: #{mefg_forward.1} parent=51 // pred_check_branch
        %1154 = sbr.rel (%p1152) target = $region56
      $region55: #{mefg_forward.1} parent=51 // pred_region
        %s1155 = smul.u32 32, %s18
        %p1156 = scmp.lt.s32.totalorder %s1155, 127
        %s1157 = scalar_select %p1156, %s1155, 127
        %s1158 = smul.addr %s1157, 8
        %s1159 = scalar_lea.vmem %s6, %s1158
      $region56: #{mefg_forward.1} parent=51 // pred_fallthru
        _
    $region52: #{mefg_forward.1} parent=5 // pred_fallthru
      _
  $region6: #{mefg_forward.1} parent=0 // loop_footer
    %s16 = sadd.s32 1, %s12
  $region7: #{mefg_forward.1} parent=0 // loop_footer_branch
    %11 = sbr.rel target = $region3
  $region8: #{mefg_forward.1} parent=0 // loop_exit
    _

</llo_original>
